<compile_context>
chip_gen: v5e
topology: v5e:2x2
jax: 0.10.0
libtpu: 0.0.40
codegen_flags: <defaults>
</compile_context>

<pallas_src>
import jax
import jax.numpy as jnp
from jax.experimental import pallas as pl
from jax.experimental.pallas import tpu as pltpu

LANES = 128
H_IN = W_IN = 30                      # spatial size implied by the module (1x1x96 before head)
NUM_CLASSES = 10
BS = 4                                # samples per grid step (batch block)

# Per-stage geometry (flat row index = y * row_width + x).
R1 = 28 * 28                          # conv1 rows per sample (host im2col; no garbage rows)
R2 = 11 * 14 + 12                     # conv2 rows computed (166); valid columns are x < 12
R3 = 5 * 8 + 6                        # conv3 rows computed (46) on the 8x8 zero-ring grid
R4 = 2 * 5 + 3                        # conv4 rows computed (13) on the 5x5 zero-ring grid

TAPS3_A = (0, 1, 2, 3, 4)             # 5 taps x 24 ch = 120 <= 128
TAPS3_B = (5, 6, 7, 8)                # 4 taps x 24 ch = 96
TAPS4_GROUPS = ((0, 1), (2, 3), (4, 5), (6, 7), (8,))   # <= 2 taps x 48 ch = 96


# ----------------------------- in-kernel helpers ---------------------------- #

def _pack_taps(src_ref, row_w, n_rows, taps, cin):
    """Assemble the K-merged conv input for one matmul.

    Tap k = (di, dj) is the row-shifted view src[di*row_w + dj : +n_rows]; its valid
    channels sit in lanes [0, cin) and all other lanes are exactly zero (weights and
    biases are zero-padded past the real channel count and ReLU(0)=0).  Each tap is
    lane-rolled by cin*idx into its own disjoint lane block, so a VPU add is a pure
    placement and the result is the (n_rows, 128) K-packed matrix.
    """
    acc = None
    for idx, k in enumerate(taps):
        di, dj = k // 3, k % 3
        tap = src_ref[pl.ds(di * row_w + dj, n_rows), :]
        if idx:
            tap = pltpu.roll(tap, shift=cin * idx, axis=1)      # XLU slot, ~free vs VPU/MXU
        acc = tap if acc is None else acc + tap
    return acc


# --------------------------------- kernel ----------------------------------- #

def _net_v3_kernel(x_ref, w1, b1, w2, b2, w3a, w3b, b3, w4, b4, wo, bo,
                   out_ref, c1, a2, c2, a3, c3, a4, hin):
    # Zero the pad rings once per grid step (outside the per-sample loop): pooling only
    # writes interior rows, so the ring stays zero for all BS samples of this step.
    a3[...] = jnp.zeros_like(a3)
    a4[...] = jnp.zeros_like(a4)

    for b in range(BS):
        # ---- Stage 1: conv 3->12 via host-side im2col -> ONE K=27 matmul, + ReLU.
        xs = x_ref[pl.ds(b * R1, R1), :]                               # (784, 128) bf16
        y1 = jnp.dot(xs, w1[...], preferred_element_type=jnp.float32) + b1[...]
        y1 = jnp.maximum(y1, 0.0)
        # Pre-max along x: m[r] = max(y[r], y[r+1]) -> pool needs 2 strided reads, not 4.
        c1[pl.ds(0, R1 - 1), :] = jnp.maximum(y1[:-1], y1[1:])
        # pool1: 28x28 -> 14x14
        for py in range(14):
            base = 2 * py * 28
            a2[pl.ds(py * 14, 14), :] = jnp.maximum(
                c1[pl.ds(base, 14, stride=2), :],
                c1[pl.ds(base + 28, 14, stride=2), :]).astype(a2.dtype)

        # ---- Stage 2: conv 12->24 (valid), all 9 taps K-merged (108 <= 128) -> 1 matmul.
        p2 = _pack_taps(a2, 14, R2, range(9), 12)
        y2 = jnp.dot(p2, w2[...], preferred_element_type=jnp.float32) + b2[...]
        y2 = jnp.maximum(y2, 0.0)
        c2[pl.ds(0, R2 - 1), :] = jnp.maximum(y2[:-1], y2[1:])
        # pool2: 12x12 -> 6x6, written into the interior of the zero-ring 8x8 grid.
        for py in range(6):
            base = 2 * py * 14
            a3[pl.ds((py + 1) * 8 + 1, 6), :] = jnp.maximum(
                c2[pl.ds(base, 6, stride=2), :],
                c2[pl.ds(base + 14, 6, stride=2), :]).astype(a3.dtype)

        # ---- Stage 3: conv 24->48 (pad=1 via zero ring), taps K-merged into 2 matmuls.
        pA = _pack_taps(a3, 8, R3, TAPS3_A, 24)
        pB = _pack_taps(a3, 8, R3, TAPS3_B, 24)
        y3 = (jnp.dot(pA, w3a[...], preferred_element_type=jnp.float32)
              + jnp.dot(pB, w3b[...], preferred_element_type=jnp.float32) + b3[...])
        y3 = jnp.maximum(y3, 0.0)
        c3[pl.ds(0, R3 - 1), :] = jnp.maximum(y3[:-1], y3[1:])
        # pool3: 6x6 -> 3x3 into the interior of the zero-ring 5x5 grid.
        for py in range(3):
            base = 2 * py * 8
            a4[pl.ds((py + 1) * 5 + 1, 3), :] = jnp.maximum(
                c3[pl.ds(base, 3, stride=2), :],
                c3[pl.ds(base + 8, 3, stride=2), :]).astype(a4.dtype)

        # ---- Stage 4: conv 48->96 (pad=1), taps K-merged into 5 matmuls (2 taps each).
        y4 = b4[...]
        for gi, group in enumerate(TAPS4_GROUPS):
            pg = _pack_taps(a4, 5, R4, group, 48)
            y4 = y4 + jnp.dot(pg, w4[gi], preferred_element_type=jnp.float32)
        y4 = jnp.maximum(y4, 0.0)
        # Final 2x2 pool of the 3x3 map -> 1x1: pixels (0,0),(0,1),(1,0),(1,1).
        hin[pl.ds(b, 1), :] = jnp.maximum(
            jnp.maximum(y4[0:1, :], y4[1:2, :]),
            jnp.maximum(y4[5:6, :], y4[6:7, :]))

    # ---- Head: Linear(96 -> 10) in f32 + masked Softmax over the batch block.
    logits = jnp.dot(hin[...], wo[...], preferred_element_type=jnp.float32) + bo[...]
    lane = jax.lax.broadcasted_iota(jnp.int32, (BS, LANES), 1)
    logits = jnp.where(lane < NUM_CLASSES, logits, -1e30)
    m = jnp.max(logits, axis=-1, keepdims=True)
    e = jnp.exp(logits - m)
    s = jnp.sum(e, axis=-1, keepdims=True)
    inv = pl.reciprocal(s, approx=True)          # EUP slot
    inv = inv * (2.0 - s * inv)                  # one Newton step -> sums to ~1
    out_ref[...] = (e * inv).reshape(BS, 1, LANES)


# ------------------------------ host-side packing ---------------------------- #

def _roll_shifts_toward_higher_lanes():
    """Tiny one-off probe of pltpu.roll's compiled lane direction so the host-side
    K-packed weight layout can never disagree with the kernel."""
    def k(x_ref, o_ref):
        o_ref[...] = pltpu.roll(x_ref[...], shift=1, axis=1)
    x = jnp.broadcast_to(jnp.arange(LANES, dtype=jnp.float32)[None, :], (8, LANES))
    y = pl.pallas_call(k, out_shape=jax.ShapeDtypeStruct((8, LANES), jnp.float32))(x)
    return bool(y[0, 1] == 0.0)                  # jnp.roll semantics: old lane 0 -> lane 1


def _tap_matrix(w_taps, cin, cout, roll_up):
    """(T, cin, cout) tap-group weights -> (128, 128) bf16 K-packed matrix whose row
    blocks line up with the kernel's lane-rolled activation blocks."""
    m = jnp.zeros((LANES, LANES), jnp.float32)
    for idx in range(w_taps.shape[0]):
        base = (cin * idx) if roll_up else ((LANES - cin * idx) % LANES)
        m = m.at[base:base + cin, :cout].set(w_taps[idx])
    return m.astype(jnp.bfloat16)


def _pad128(a, dtype=jnp.bfloat16):
    r, c = a.shape
    return jnp.zeros((LANES, LANES), jnp.float32).at[:r, :c].set(a).astype(dtype)


def pack_params(params):
    """One-time repack (hoisted out of the forward path): K-merged, 128-padded tap
    matrices for the convs, f32 head.  Conv weights are (kh, kw, Cin, Cout)."""
    up = _roll_shifts_toward_higher_lanes()
    w3r = params["w3"].reshape(9, 24, 48)
    w4r = params["w4"].reshape(9, 48, 96)
    packed = {
        "w1": _pad128(params["w1"].reshape(27, 12)),                    # host im2col: lane = tap*3 + c
        "w2": _tap_matrix(params["w2"].reshape(9, 12, 24), 12, 24, up),
        "w3a": _tap_matrix(w3r[0:5], 24, 48, up),
        "w3b": _tap_matrix(w3r[5:9], 24, 48, up),
        "w4": jnp.stack([_tap_matrix(w4r[g[0]:g[-1] + 1], 48, 96, up)
                         for g in TAPS4_GROUPS]),
        "wo": _pad128(params["wo"], dtype=jnp.float32),                 # head stays f32 (tiny)
    }
    for i, cout in ((1, 12), (2, 24), (3, 48), (4, 96)):
        packed[f"b{i}"] = jnp.zeros((1, LANES), jnp.float32).at[0, :cout].set(params[f"b{i}"])
    packed["bo"] = jnp.zeros((1, LANES), jnp.float32).at[0, :NUM_CLASSES].set(params["bo"])
    return packed


# ------------------------------ host-side wrapper ---------------------------- #

@jax.jit
def net_v3_forward(packed, x_nchw):
    n, c_in, h, w = x_nchw.shape
    assert (h, w) == (H_IN, W_IN), "net_v3 head requires 30x30 inputs (1x1x96 after trunk)"
    assert c_in == 3

    n_pad = ((n + BS - 1) // BS) * BS
    if n_pad != n:
        x_nchw = jnp.pad(x_nchw, ((0, n_pad - n), (0, 0), (0, 0), (0, 0)))

    # Host-side im2col for stage 1: (n,3,30,30) -> (n*784, 128) bf16 rows;
    # lane = (3*di + dj)*3 + c for 3x3 tap (di,dj) and input channel c.
    xh = jnp.transpose(x_nchw, (0, 2, 3, 1)).astype(jnp.float32)        # (n,30,30,3)
    taps = [xh[:, di:di + 28, dj:dj + 28, :] for di in range(3) for dj in range(3)]
    pat = jnp.stack(taps, axis=3).reshape(n_pad, R1, 27)
    pat = jnp.pad(pat, ((0, 0), (0, 0), (0, LANES - 27))).astype(jnp.bfloat16)
    x_rows = pat.reshape(n_pad * R1, LANES)

    def whole(shape):                       # grid-invariant blocks (weights / biases)
        return pl.BlockSpec(shape, lambda i: (0,) * len(shape))

    grid_spec = pltpu.PrefetchScalarGridSpec(
        num_scalar_prefetch=0,
        grid=(n_pad // BS,),
        in_specs=[
            pl.BlockSpec((BS * R1, LANES), lambda i: (i, 0)),           # im2col'd input rows
            whole((LANES, LANES)), whole((1, LANES)),                   # w1, b1
            whole((LANES, LANES)), whole((1, LANES)),                   # w2, b2
            whole((LANES, LANES)), whole((LANES, LANES)),               # w3a, w3b
            whole((1, LANES)),                                          # b3
            whole((5, LANES, LANES)), whole((1, LANES)),                # w4 (5 tap groups), b4
            whole((LANES, LANES)), whole((1, LANES)),                   # wo, bo
        ],
        out_specs=pl.BlockSpec((BS, 1, LANES), lambda i: (i, 0, 0)),
        scratch_shapes=[
            pltpu.VMEM((R1, LANES), jnp.float32),       # c1: conv1 rows, x-pre-maxed
            pltpu.VMEM((196, LANES), jnp.bfloat16),     # a2: pooled 14x14
            pltpu.VMEM((168, LANES), jnp.float32),      # c2: conv2 rows, x-pre-maxed
            pltpu.VMEM((64, LANES), jnp.bfloat16),      # a3: 8x8 zero-ring grid (6x6 interior)
            pltpu.VMEM((48, LANES), jnp.float32),       # c3: conv3 rows, x-pre-maxed
            pltpu.VMEM((25, LANES), jnp.bfloat16),      # a4: 5x5 zero-ring grid (3x3 interior)
            pltpu.VMEM((BS, LANES), jnp.float32),       # hin: pooled 1x1x96 per sample
        ],
    )

    rows_per_sample = R1 + R2 + 2 * R3 + 5 * R4 + 1
    cost = pl.CostEstimate(
        flops=2 * LANES * LANES * rows_per_sample * n_pad,
        transcendentals=(LANES + 1) * n_pad,
        bytes_accessed=x_rows.size * 2 + 9 * LANES * LANES * 2 + LANES * LANES * 4
                       + 5 * LANES * 4 + n_pad * LANES * 4)

    out = pl.pallas_call(
        _net_v3_kernel,
        out_shape=jax.ShapeDtypeStruct((n_pad, 1, LANES), jnp.float32),
        grid_spec=grid_spec,
        compiler_params=pltpu.CompilerParams(
            dimension_semantics=("parallel",),          # shard batch blocks across TCs
            vmem_limit_bytes=32 * 1024 * 1024),         # safe on v5e/v6e/v7x (64 MiB/TC)
        cost_estimate=cost,
    )(x_rows, packed["w1"], packed["b1"], packed["w2"], packed["b2"],
      packed["w3a"], packed["w3b"], packed["b3"], packed["w4"], packed["b4"],
      packed["wo"], packed["bo"])

    return out.reshape(n_pad, LANES)[:n, :NUM_CLASSES]


# ------------------------- reference / params / main ------------------------- #

def init_params(key):
    """Deterministic synthetic parameters (shapes match net_v3.__init__)."""
    def conv_w(k, kh, kw, cin, cout):
        return jax.random.normal(k, (kh, kw, cin, cout), jnp.float32) / jnp.sqrt(kh * kw * cin)

    ks = jax.random.split(key, 10)
    return {
        "w1": conv_w(ks[0], 3, 3, 3, 12),
        "b1": 0.01 * jax.random.normal(ks[1], (12,), jnp.float32),
        "w2": conv_w(ks[2], 3, 3, 12, 24),
        "b2": 0.01 * jax.random.normal(ks[3], (24,), jnp.float32),
        "w3": conv_w(ks[4], 3, 3, 24, 48),
        "b3": 0.01 * jax.random.normal(ks[5], (48,), jnp.float32),
        "w4": conv_w(ks[6], 3, 3, 48, 96),
        "b4": 0.01 * jax.random.normal(ks[7], (96,), jnp.float32),
        "wo": jax.random.normal(ks[8], (96, 10), jnp.float32) / jnp.sqrt(96.0),
        "bo": 0.01 * jax.random.normal(ks[9], (10,), jnp.float32),
    }


def net_v3_reference(params, x_nchw):
    """Pure-XLA reference with the exact PyTorch-module semantics (f32)."""
    x = jnp.transpose(x_nchw, (0, 2, 3, 1)).astype(jnp.float32)

    def conv_relu(t, w, b, pad):
        y = jax.lax.conv_general_dilated(
            t, w, window_strides=(1, 1), padding=[(pad, pad), (pad, pad)],
            dimension_numbers=("NHWC", "HWIO", "NHWC"))
        return jax.nn.relu(y + b)

    def pool(t):
        return jax.lax.reduce_window(t, -jnp.inf, jax.lax.max,
                                     (1, 2, 2, 1), (1, 2, 2, 1), "VALID")

    x = pool(conv_relu(x, params["w1"], params["b1"], 0))
    x = pool(conv_relu(x, params["w2"], params["b2"], 0))
    x = pool(conv_relu(x, params["w3"], params["b3"], 1))
    x = pool(conv_relu(x, params["w4"], params["b4"], 1))
    x = x.reshape(-1, 96)
    return jax.nn.softmax(x @ params["wo"] + params["bo"], axis=-1)


if __name__ == "__main__":
    key = jax.random.PRNGKey(0)
    pkey, xkey = jax.random.split(key)
    params = init_params(pkey)
    packed = pack_params(params)                 # one-time weight repack / K-merge

    # 30x30 inputs (spatial size implied by the module); 8 samples -> 2 batch blocks.
    x = jax.random.normal(xkey, (8, 3, 30, 30), jnp.float32)

    out = jax.block_until_ready(net_v3_forward(packed, x))

    assert out.shape == (8, NUM_CLASSES)
    assert bool(jnp.allclose(jnp.sum(out, axis=1), 1.0, atol=1e-4))

    ref = net_v3_reference(params, x)
    max_err = float(jnp.max(jnp.abs(out - ref)))
    assert max_err < 5e-2, f"kernel/reference mismatch: {max_err}"

    print("KERNEL_OK")
</pallas_src>

<mosaic_0001>
module attributes {stable_mosaic.version = 11 : i64} {
  func.func @k(%arg0: memref<8x128xf32, #tpu.memory_space<vmem>>, %arg1: memref<8x128xf32, #tpu.memory_space<vmem>>) attributes {dimension_semantics = [], scalar_prefetch = 0 : i64, scratch_operands = 0 : i64, tpu.core_type = #tpu.core_type<tc>} {
    %c0 = arith.constant 0 : index
    %c0_0 = arith.constant 0 : index
    %0 = vector.load %arg0[%c0, %c0_0] : memref<8x128xf32, #tpu.memory_space<vmem>>, vector<8x128xf32>
    %c1_i32 = arith.constant 1 : i32
    %1 = tpu.dynamic_rotate %0 by %c1_i32 dim 1 : vector<8x128xf32>, i32 -> vector<8x128xf32>
    %c0_1 = arith.constant 0 : index
    %c0_2 = arith.constant 0 : index
    %2 = vector.load %arg1[%c0_1, %c0_2] : memref<8x128xf32, #tpu.memory_space<vmem>>, vector<8x128xf32>
    tpu.vector_store %arg1[%c0_1, %c0_2], %1 {strides = array<i32>} : memref<8x128xf32, #tpu.memory_space<vmem>>, vector<8x128xf32>,
    return
  }
}

</mosaic_0001>

<llo_original>
// kernel: tpu_custom_call.1
$region0: #{tpu_custom_call.1}
  #allocation0 [shape = 'u32[]', space=smem, size = 0x4, offset = 0x4, fixed_abs, tag = 'smem constant byte address 0x4 - core index']
  #allocation1 [shape = 'u32[72,128]{1,0:T(1,128)}', space=vmem, size = 0x9000, scoped, tag = 'internal scratch']
  %s0 = inlined_call_operand.hbm [shape: f32[8,128], index: 0, kind: input, shape index: {}]
  %s1 = inlined_call_operand.hbm [shape: f32[8,128], index: 1, kind: output, shape index: {}]
  %s2 = sld [smem:[#allocation0]]
  $region18: #{tpu_custom_call.1} parent=0
    _
  %s4 = ssub.s32 1, %s2
  %s5 = scalar_select 0, %s4, %s2
  $region1: #{tpu_custom_call.1} parent=0
    #allocation2 [shape = 'u8[4096]{0}', space=vmem, size = 0x1000, scoped, tag = 'input window, operand 0, single buffered']
    #allocation3 [shape = 's32[1]{0}', space=sflag, size = 0x4, scoped, tag = 'scoped memory for tpu_custom_call.1']
    #allocation4 [shape = 's32[1]{0}', space=sflag, size = 0x4, scoped, tag = 'scoped memory for tpu_custom_call.1']
    #allocation5 [shape = 'u8[4096]{0}', space=vmem, size = 0x1000, scoped, tag = 'output window, operand 0, single buffered']
    %6 = vsyncpa [#allocation3], 0
    %7 = vsyncpa [#allocation4], 0
    // Predicated region
    $region2: #{tpu_custom_call.1} parent=1 // pred_check
      _
    $region3: #{tpu_custom_call.1} parent=1 // pred_check_branch
      %9 = sbr.rel (0) target = $region5
    $region4: #{tpu_custom_call.1} parent=1 // pred_region
      %11 = vsyncadd [#allocation3], 0
      %s13 = sshll.u32 %s0, 4
      %s14 = int_to_ptr.hbm [resolvable:$true] %s13
      %s15 = sshll.u32 [#allocation2], 4
      %s16 = int_to_ptr.vmem [resolvable:$true] %s15
      %18 = dma.hbm_to_vmem [thread:$0]  %s14, 128, %s16, [#allocation3]
    $region5: #{tpu_custom_call.1} parent=1 // pred_fallthru
      _
    // Predicated region
    $region6: #{tpu_custom_call.1} parent=1 // pred_check
      _
    $region7: #{tpu_custom_call.1} parent=1 // pred_check_branch
      %20 = sbr.rel (0) target = $region9
    $region8: #{tpu_custom_call.1} parent=1 // pred_region
      %22 = dma.done [#allocation3], 128
    $region9: #{tpu_custom_call.1} parent=1 // pred_fallthru
      _
    %v23 = vld [vmem:[#allocation2] sm:$0xff]
    %24 = vrot.lane.b32.xlu0 %v23, 1
    %v25 = vpop.permute.xlu0 %24
    %26 = vst [vmem:[#allocation5] sm:$0xff] %v25
    // Predicated region
    $region10: #{tpu_custom_call.1} parent=1 // pred_check
      _
    $region11: #{tpu_custom_call.1} parent=1 // pred_check_branch
      %28 = sbr.rel (0) target = $region13
    $region12: #{tpu_custom_call.1} parent=1 // pred_region
      %30 = vsyncadd [#allocation4], 0
      %s32 = sshll.u32 [#allocation5], 4
      %s33 = int_to_ptr.vmem [resolvable:$true] %s32
      %s34 = sshll.u32 %s1, 4
      %s35 = int_to_ptr.hbm [resolvable:$true] %s34
      %37 = dma.vmem_to_hbm [thread:$0]  %s33, 128, %s35, [#allocation4]
    $region13: #{tpu_custom_call.1} parent=1 // pred_fallthru
      _
    // Predicated region
    $region14: #{tpu_custom_call.1} parent=1 // pred_check
      _
    $region15: #{tpu_custom_call.1} parent=1 // pred_check_branch
      %39 = sbr.rel (0) target = $region17
    $region16: #{tpu_custom_call.1} parent=1 // pred_region
      %41 = dma.done [#allocation4], 128
    $region17: #{tpu_custom_call.1} parent=1 // pred_fallthru
      _
    %42 = vsyncpa [#allocation3], 1
    %43 = vsyncpa [#allocation4], 1

</llo_original>
